<compile_context>
chip_gen: v6e
topology: v6e:2x2x1
jax: 0.10.0
libtpu: 0.0.40
codegen_flags: <defaults>
</compile_context>

<pallas_src>
import functools

import jax
import jax.numpy as jnp
import numpy as np
from jax import lax
from jax.experimental import pallas as pl
from jax.experimental.pallas import tpu as pltpu

_EPS = 1e-4                  # pytorch3d se3_exp_map / so3_exp_map eps (clamp on squared angle)
_LANE = 128                  # TPU lane width
_MAX_LANES_PER_STEP = 1024   # poses per grid step (8 x 128-lane chunks)


def _round_up(x, m):
    return (x + m - 1) // m * m


def _se3_pose_kernel(w_ref, ids_ref, out_ref, *, num_chunks):
    """w_ref: (24, Fp) f32  rows 0-7 / 8-15 / 16-23 = hi / mid / lo bf16-exact weight pieces,
                            within each piece rows 0-2 = log_translation, 3-5 = log_rotation,
                            frames along lanes.
       ids_ref: (1, T) int32  frame ids, batch along lanes.
       out_ref: (16, T) f32   row 4*i + j holds pose[:, i, j] (row-major flattened 4x4)."""
    w_hi = w_ref[0:8, :]
    w_md = w_ref[8:16, :]
    w_lo = w_ref[16:24, :]
    fp = w_hi.shape[1]

    # Hoisted loop invariants.
    frame_iota = lax.broadcasted_iota(jnp.int32, (fp, _LANE), 0)
    n_lanes = out_ref.shape[1]
    # Constant bottom row of every pose: [0, 0, 0, 1] -> output rows 12..15, whole tile.
    out_ref[12:15, :] = jnp.zeros((3, n_lanes), jnp.float32)
    out_ref[15:16, :] = jnp.ones((1, n_lanes), jnp.float32)

    for c in range(num_chunks):
        c0 = c * _LANE
        c1 = c0 + _LANE
        ids = ids_ref[0:1, c0:c1]                                  # (1, 128) int32

        # ---- fused embedding gather via one-hot MXU matmul -------------------------------
        onehot = jnp.where(frame_iota == ids, 1.0, 0.0)            # (Fp, 128) f32, 0/1
        rep = (jnp.dot(w_hi, onehot, preferred_element_type=jnp.float32)
               + jnp.dot(w_md, onehot, preferred_element_type=jnp.float32)
               + jnp.dot(w_lo, onehot, preferred_element_type=jnp.float32))   # (8, 128)

        ux, uy, uz = rep[0:1, :], rep[1:2, :], rep[2:3, :]         # log_translation
        wx, wy, wz = rep[3:4, :], rep[4:5, :], rep[5:6, :]         # log_rotation

        # ---- se3_exp_map math (EUP rsqrt instead of sqrt + divides) ----------------------
        wxx, wyy, wzz = wx * wx, wy * wy, wz * wz
        wxy, wxz, wyz = wx * wy, wx * wz, wy * wz

        theta2 = jnp.maximum(wxx + wyy + wzz, _EPS)                # torch.clamp(nrms, eps)
        inv_t = lax.rsqrt(theta2)                                  # EUP
        theta = theta2 * inv_t
        inv_t2 = inv_t * inv_t
        sin_t = jnp.sin(theta)
        cos_t = jnp.cos(theta)
        fac1 = sin_t * inv_t                                       # sin(t)/t
        fac2 = (1.0 - cos_t) * inv_t2                              # (1-cos t)/t^2
        fac3 = (theta - sin_t) * (inv_t2 * inv_t)                  # (t-sin t)/t^3

        # R = I + fac1*hat(w) + fac2*hat(w)^2
        r00 = 1.0 - fac2 * (wyy + wzz)
        r01 = -fac1 * wz + fac2 * wxy
        r02 = fac1 * wy + fac2 * wxz
        r10 = fac1 * wz + fac2 * wxy
        r11 = 1.0 - fac2 * (wxx + wzz)
        r12 = -fac1 * wx + fac2 * wyz
        r20 = -fac1 * wy + fac2 * wxz
        r21 = fac1 * wx + fac2 * wyz
        r22 = 1.0 - fac2 * (wxx + wyy)

        # V = I + fac2*hat(w) + fac3*hat(w)^2
        v00 = 1.0 - fac3 * (wyy + wzz)
        v01 = -fac2 * wz + fac3 * wxy
        v02 = fac2 * wy + fac3 * wxz
        v10 = fac2 * wz + fac3 * wxy
        v11 = 1.0 - fac3 * (wxx + wzz)
        v12 = -fac2 * wx + fac3 * wyz
        v20 = -fac2 * wy + fac3 * wxz
        v21 = fac2 * wx + fac3 * wyz
        v22 = 1.0 - fac3 * (wxx + wyy)

        # t = V @ log_translation
        tx = v00 * ux + v01 * uy + v02 * uz
        ty = v10 * ux + v11 * uy + v12 * uz
        tz = v20 * ux + v21 * uy + v22 * uz

        # ---- direct lane-dense row stores (no concatenate) -------------------------------
        out_ref[0:1, c0:c1] = r00
        out_ref[1:2, c0:c1] = r01
        out_ref[2:3, c0:c1] = r02
        out_ref[3:4, c0:c1] = tx
        out_ref[4:5, c0:c1] = r10
        out_ref[5:6, c0:c1] = r11
        out_ref[6:7, c0:c1] = r12
        out_ref[7:8, c0:c1] = ty
        out_ref[8:9, c0:c1] = r20
        out_ref[9:10, c0:c1] = r21
        out_ref[10:11, c0:c1] = r22
        out_ref[11:12, c0:c1] = tz


@functools.partial(jax.jit, static_argnames=("return_packed",))
def camera_pose_forward(weight, frame_ids, return_packed=False):
    """weight: (num_frames, 6) f32 embedding table, frame_ids: (B,) int -> (B, 4, 4) f32
       (or, with return_packed=True, the lane-dense (16, B) layout: row 4*i+j = pose[:, i, j])."""
    B = frame_ids.shape[0]
    F = weight.shape[0]
    assert weight.shape[1] == 6
    Fp = _round_up(F, _LANE)

    # O(num_frames) batch-independent weight prep: transpose, pad, and split into three
    # bf16-exact f32 pieces so the in-kernel one-hot MXU gather is exact.
    wt = jnp.pad(weight.astype(jnp.float32).T, ((0, 2), (0, Fp - F)))   # (8, Fp)
    w_hi = wt.astype(jnp.bfloat16).astype(jnp.float32)
    rem = wt - w_hi
    w_md = rem.astype(jnp.bfloat16).astype(jnp.float32)
    w_lo = rem - w_md
    w24 = jnp.concatenate([w_hi, w_md, w_lo], axis=0)                   # (24, Fp)

    lanes = min(_MAX_LANES_PER_STEP, _round_up(B, _LANE))               # poses per grid step
    Bp = _round_up(B, lanes)
    nsteps = Bp // lanes
    num_chunks = lanes // _LANE

    # Padded ids default to 0 (a valid table row); padded lanes are sliced off below.
    ids = jnp.pad(frame_ids.astype(jnp.int32), (0, Bp - B)).reshape(1, Bp)

    out = pl.pallas_call(
        functools.partial(_se3_pose_kernel, num_chunks=num_chunks),
        out_shape=jax.ShapeDtypeStruct((16, Bp), jnp.float32),
        grid=(nsteps,),
        in_specs=[
            pl.BlockSpec((24, Fp), lambda i: (0, 0)),      # whole weight table, VMEM-resident
            pl.BlockSpec((1, lanes), lambda i: (0, i)),    # frame ids, batch on lanes
        ],
        out_specs=pl.BlockSpec((16, lanes), lambda i: (0, i)),
        compiler_params=pltpu.CompilerParams(dimension_semantics=("parallel",)),
    )(w24, ids)

    if return_packed:
        return out[:, :B]
    # Kept only to honor the module's (B, 4, 4) return contract; downstream consumers that
    # can take the lane-dense layout should pass return_packed=True and skip this transpose.
    return out[:, :B].T.reshape(B, 4, 4)


class CameraPoseParams:
    """JAX port of the PyTorch module; the gather + se3_exp_map run inside one Pallas kernel."""

    def __init__(self, num_frames, key):
        self.num_frames = num_frames
        # nn.Embedding(num_frames, 6) default init: N(0, 1)
        self.se3_log_reps = jax.random.normal(key, (num_frames, 6), dtype=jnp.float32)

    def __call__(self, frame_ids, return_packed=False):
        assert frame_ids.ndim == 1, "se3_exp_map expects (N, 6) log reps -> 1-D frame_ids"
        return camera_pose_forward(self.se3_log_reps, frame_ids, return_packed=return_packed)


def _reference(weight, frame_ids):
    """Pure numpy re-implementation of se3_exp_map(log_rep).transpose(-2,-1)."""
    weight = np.asarray(weight, dtype=np.float64)
    ids = np.asarray(frame_ids)
    log_rep = weight[ids]
    u, w = log_rep[:, :3], log_rep[:, 3:]
    n = log_rep.shape[0]

    theta2 = np.clip((w ** 2).sum(-1), _EPS, None)
    theta = np.sqrt(theta2)
    sin_t, cos_t = np.sin(theta), np.cos(theta)

    skew = np.zeros((n, 3, 3))
    skew[:, 0, 1], skew[:, 0, 2] = -w[:, 2], w[:, 1]
    skew[:, 1, 0], skew[:, 1, 2] = w[:, 2], -w[:, 0]
    skew[:, 2, 0], skew[:, 2, 1] = -w[:, 1], w[:, 0]
    skew2 = skew @ skew
    eye = np.eye(3)[None]

    R = eye + (sin_t / theta)[:, None, None] * skew \
        + ((1.0 - cos_t) / theta2)[:, None, None] * skew2
    V = eye + ((1.0 - cos_t) / theta2)[:, None, None] * skew \
        + ((theta - sin_t) / (theta2 * theta))[:, None, None] * skew2
    t = (V @ u[:, :, None])[:, :, 0]

    pose = np.zeros((n, 4, 4))
    pose[:, :3, :3] = R
    pose[:, :3, 3] = t
    pose[:, 3, 3] = 1.0
    return pose.astype(np.float32)


if __name__ == "__main__":
    key = jax.random.PRNGKey(0)
    k_w, k_ids = jax.random.split(key)

    # Small demo shapes (matches the module: an embedding table + a 1-D batch of frame ids).
    num_frames, batch = 16, 8
    model = CameraPoseParams(num_frames, k_w)
    frame_ids = jax.random.randint(k_ids, (batch,), 0, num_frames, dtype=jnp.int32)

    pose = jax.block_until_ready(model(frame_ids))
    assert pose.shape == (batch, 4, 4)
    assert pose.dtype == jnp.float32
    # atol slightly above f32 noise to leave margin for the EUP rsqrt factors.
    np.testing.assert_allclose(np.asarray(pose),
                               _reference(model.se3_log_reps, frame_ids),
                               rtol=1e-5, atol=2e-5)

    # Second check exercising table padding, multi-chunk tiles and a multi-step parallel grid.
    k_w2, k_ids2 = jax.random.split(k_ids)
    num_frames2, batch2 = 200, 2500
    model2 = CameraPoseParams(num_frames2, k_w2)
    frame_ids2 = jax.random.randint(k_ids2, (batch2,), 0, num_frames2, dtype=jnp.int32)
    pose2 = jax.block_until_ready(model2(frame_ids2))
    np.testing.assert_allclose(np.asarray(pose2),
                               _reference(model2.se3_log_reps, frame_ids2),
                               rtol=1e-5, atol=2e-5)

    print("KERNEL_OK")
</pallas_src>

<mosaic_0001>
module attributes {stable_mosaic.version = 11 : i64} {
  func.func @_se3_pose_kernel(%arg0: i32, %arg1: memref<24x128xf32, #tpu.memory_space<vmem>>, %arg2: memref<1x128xi32, #tpu.memory_space<vmem>>, %arg3: memref<16x128xf32, #tpu.memory_space<vmem>>) attributes {dimension_semantics = [#tpu.dimension_semantics<parallel>], iteration_bounds = array<i64: 1>, scalar_prefetch = 0 : i64, scratch_operands = 0 : i64, tpu.core_type = #tpu.core_type<tc>, window_params = [{pipeline_mode = #tpu.pipeline_mode<synchronous>, transform_indices = @transform_0, window_bounds = array<i64: 24, 128>}, {transform_indices = @transform_1, window_bounds = array<i64: 1, 128>}, {transform_indices = @transform_2, window_bounds = array<i64: 16, 128>}]} {
    %c0 = arith.constant 0 : index
    %c0_0 = arith.constant 0 : index
    %0 = vector.load %arg1[%c0, %c0_0] : memref<24x128xf32, #tpu.memory_space<vmem>>, vector<8x128xf32>
    %c8 = arith.constant 8 : index
    %c0_1 = arith.constant 0 : index
    %1 = vector.load %arg1[%c8, %c0_1] : memref<24x128xf32, #tpu.memory_space<vmem>>, vector<8x128xf32>
    %c16 = arith.constant 16 : index
    %c0_2 = arith.constant 0 : index
    %2 = vector.load %arg1[%c16, %c0_2] : memref<24x128xf32, #tpu.memory_space<vmem>>, vector<8x128xf32>
    %3 = tpu.iota {dimensions = array<i32: 0>} : vector<128x128xi32>
    %cst = arith.constant 0.000000e+00 : f32
    %4 = vector.broadcast %cst : f32 to vector<3x128xf32>
    %c12 = arith.constant 12 : index
    %c0_3 = arith.constant 0 : index
    %5 = vector.load %arg3[%c12, %c0_3] : memref<16x128xf32, #tpu.memory_space<vmem>>, vector<3x128xf32>
    tpu.vector_store %arg3[%c12, %c0_3], %4 {strides = array<i32>} : memref<16x128xf32, #tpu.memory_space<vmem>>, vector<3x128xf32>,
    %cst_4 = arith.constant 1.000000e+00 : f32
    %6 = vector.broadcast %cst_4 : f32 to vector<1x128xf32>
    %c15 = arith.constant 15 : index
    %c0_5 = arith.constant 0 : index
    %7 = vector.load %arg3[%c15, %c0_5] : memref<16x128xf32, #tpu.memory_space<vmem>>, vector<1x128xf32>
    tpu.vector_store %arg3[%c15, %c0_5], %6 {strides = array<i32>} : memref<16x128xf32, #tpu.memory_space<vmem>>, vector<1x128xf32>,
    %c0_6 = arith.constant 0 : index
    %c0_7 = arith.constant 0 : index
    %8 = vector.load %arg2[%c0_6, %c0_7] : memref<1x128xi32, #tpu.memory_space<vmem>>, vector<1x128xi32>
    %9 = vector.broadcast %8 : vector<1x128xi32> to vector<128x128xi32>
    %10 = arith.cmpi eq, %3, %9 : vector<128x128xi32>
    %cst_8 = arith.constant 1.000000e+00 : f32
    %cst_9 = arith.constant 0.000000e+00 : f32
    %11 = vector.broadcast %cst_8 : f32 to vector<128x128xf32>
    %12 = vector.broadcast %cst_9 : f32 to vector<128x128xf32>
    %13 = arith.select %10, %11, %12 : vector<128x128xi1>, vector<128x128xf32>
    %cst_10 = arith.constant dense<0.000000e+00> : vector<8x128xf32>
    %14 = tpu.matmul %0, %13, %cst_10 {dimension_numbers = #tpu.dot_dimension_numbers<[1], [0], [0], [1], [0, 0, 1, 1], [], []>} : vector<8x128xf32>, vector<128x128xf32>, vector<8x128xf32> -> vector<8x128xf32>
    %cst_11 = arith.constant dense<0.000000e+00> : vector<8x128xf32>
    %15 = tpu.matmul %1, %13, %cst_11 {dimension_numbers = #tpu.dot_dimension_numbers<[1], [0], [0], [1], [0, 0, 1, 1], [], []>} : vector<8x128xf32>, vector<128x128xf32>, vector<8x128xf32> -> vector<8x128xf32>
    %16 = arith.addf %14, %15 : vector<8x128xf32>
    %cst_12 = arith.constant dense<0.000000e+00> : vector<8x128xf32>
    %17 = tpu.matmul %2, %13, %cst_12 {dimension_numbers = #tpu.dot_dimension_numbers<[1], [0], [0], [1], [0, 0, 1, 1], [], []>} : vector<8x128xf32>, vector<128x128xf32>, vector<8x128xf32> -> vector<8x128xf32>
    %18 = arith.addf %16, %17 : vector<8x128xf32>
    %19 = vector.extract_strided_slice %18 {offsets = [0, 0], sizes = [1, 128], strides = [1, 1]} : vector<8x128xf32> to vector<1x128xf32>
    %20 = vector.extract_strided_slice %18 {offsets = [1, 0], sizes = [1, 128], strides = [1, 1]} : vector<8x128xf32> to vector<1x128xf32>
    %21 = vector.extract_strided_slice %18 {offsets = [2, 0], sizes = [1, 128], strides = [1, 1]} : vector<8x128xf32> to vector<1x128xf32>
    %22 = vector.extract_strided_slice %18 {offsets = [3, 0], sizes = [1, 128], strides = [1, 1]} : vector<8x128xf32> to vector<1x128xf32>
    %23 = vector.extract_strided_slice %18 {offsets = [4, 0], sizes = [1, 128], strides = [1, 1]} : vector<8x128xf32> to vector<1x128xf32>
    %24 = vector.extract_strided_slice %18 {offsets = [5, 0], sizes = [1, 128], strides = [1, 1]} : vector<8x128xf32> to vector<1x128xf32>
    %25 = arith.mulf %22, %22 : vector<1x128xf32>
    %26 = arith.mulf %23, %23 : vector<1x128xf32>
    %27 = arith.mulf %24, %24 : vector<1x128xf32>
    %28 = arith.mulf %22, %23 : vector<1x128xf32>
    %29 = arith.mulf %22, %24 : vector<1x128xf32>
    %30 = arith.mulf %23, %24 : vector<1x128xf32>
    %31 = arith.addf %25, %26 : vector<1x128xf32>
    %32 = arith.addf %31, %27 : vector<1x128xf32>
    %cst_13 = arith.constant 9.99999974E-5 : f32
    %33 = vector.broadcast %cst_13 : f32 to vector<1x128xf32>
    %34 = arith.maximumf %32, %33 : vector<1x128xf32>
    %35 = math.rsqrt %34 : vector<1x128xf32>
    %36 = arith.mulf %34, %35 : vector<1x128xf32>
    %37 = arith.mulf %35, %35 : vector<1x128xf32>
    %38 = math.sin %36 : vector<1x128xf32>
    %39 = math.cos %36 : vector<1x128xf32>
    %40 = arith.mulf %38, %35 : vector<1x128xf32>
    %cst_14 = arith.constant 1.000000e+00 : f32
    %41 = vector.broadcast %cst_14 : f32 to vector<1x128xf32>
    %42 = arith.subf %41, %39 : vector<1x128xf32>
    %43 = arith.mulf %42, %37 : vector<1x128xf32>
    %44 = arith.subf %36, %38 : vector<1x128xf32>
    %45 = arith.mulf %37, %35 : vector<1x128xf32>
    %46 = arith.mulf %44, %45 : vector<1x128xf32>
    %47 = arith.addf %26, %27 : vector<1x128xf32>
    %48 = arith.mulf %43, %47 : vector<1x128xf32>
    %cst_15 = arith.constant 1.000000e+00 : f32
    %49 = vector.broadcast %cst_15 : f32 to vector<1x128xf32>
    %50 = arith.subf %49, %48 : vector<1x128xf32>
    %cst_16 = arith.constant 0.000000e+00 : f32
    %51 = vector.broadcast %cst_16 : f32 to vector<1x128xf32>
    %52 = arith.subf %51, %40 : vector<1x128xf32>
    %53 = arith.mulf %52, %24 : vector<1x128xf32>
    %54 = arith.mulf %43, %28 : vector<1x128xf32>
    %55 = arith.addf %53, %54 : vector<1x128xf32>
    %56 = arith.mulf %40, %23 : vector<1x128xf32>
    %57 = arith.mulf %43, %29 : vector<1x128xf32>
    %58 = arith.addf %56, %57 : vector<1x128xf32>
    %59 = arith.mulf %40, %24 : vector<1x128xf32>
    %60 = arith.mulf %43, %28 : vector<1x128xf32>
    %61 = arith.addf %59, %60 : vector<1x128xf32>
    %62 = arith.addf %25, %27 : vector<1x128xf32>
    %63 = arith.mulf %43, %62 : vector<1x128xf32>
    %cst_17 = arith.constant 1.000000e+00 : f32
    %64 = vector.broadcast %cst_17 : f32 to vector<1x128xf32>
    %65 = arith.subf %64, %63 : vector<1x128xf32>
    %cst_18 = arith.constant 0.000000e+00 : f32
    %66 = vector.broadcast %cst_18 : f32 to vector<1x128xf32>
    %67 = arith.subf %66, %40 : vector<1x128xf32>
    %68 = arith.mulf %67, %22 : vector<1x128xf32>
    %69 = arith.mulf %43, %30 : vector<1x128xf32>
    %70 = arith.addf %68, %69 : vector<1x128xf32>
    %cst_19 = arith.constant 0.000000e+00 : f32
    %71 = vector.broadcast %cst_19 : f32 to vector<1x128xf32>
    %72 = arith.subf %71, %40 : vector<1x128xf32>
    %73 = arith.mulf %72, %23 : vector<1x128xf32>
    %74 = arith.mulf %43, %29 : vector<1x128xf32>
    %75 = arith.addf %73, %74 : vector<1x128xf32>
    %76 = arith.mulf %40, %22 : vector<1x128xf32>
    %77 = arith.mulf %43, %30 : vector<1x128xf32>
    %78 = arith.addf %76, %77 : vector<1x128xf32>
    %79 = arith.addf %25, %26 : vector<1x128xf32>
    %80 = arith.mulf %43, %79 : vector<1x128xf32>
    %cst_20 = arith.constant 1.000000e+00 : f32
    %81 = vector.broadcast %cst_20 : f32 to vector<1x128xf32>
    %82 = arith.subf %81, %80 : vector<1x128xf32>
    %83 = arith.addf %26, %27 : vector<1x128xf32>
    %84 = arith.mulf %46, %83 : vector<1x128xf32>
    %cst_21 = arith.constant 1.000000e+00 : f32
    %85 = vector.broadcast %cst_21 : f32 to vector<1x128xf32>
    %86 = arith.subf %85, %84 : vector<1x128xf32>
    %cst_22 = arith.constant 0.000000e+00 : f32
    %87 = vector.broadcast %cst_22 : f32 to vector<1x128xf32>
    %88 = arith.subf %87, %43 : vector<1x128xf32>
    %89 = arith.mulf %88, %24 : vector<1x128xf32>
    %90 = arith.mulf %46, %28 : vector<1x128xf32>
    %91 = arith.addf %89, %90 : vector<1x128xf32>
    %92 = arith.mulf %43, %23 : vector<1x128xf32>
    %93 = arith.mulf %46, %29 : vector<1x128xf32>
    %94 = arith.addf %92, %93 : vector<1x128xf32>
    %95 = arith.mulf %43, %24 : vector<1x128xf32>
    %96 = arith.mulf %46, %28 : vector<1x128xf32>
    %97 = arith.addf %95, %96 : vector<1x128xf32>
    %98 = arith.addf %25, %27 : vector<1x128xf32>
    %99 = arith.mulf %46, %98 : vector<1x128xf32>
    %cst_23 = arith.constant 1.000000e+00 : f32
    %100 = vector.broadcast %cst_23 : f32 to vector<1x128xf32>
    %101 = arith.subf %100, %99 : vector<1x128xf32>
    %cst_24 = arith.constant 0.000000e+00 : f32
    %102 = vector.broadcast %cst_24 : f32 to vector<1x128xf32>
    %103 = arith.subf %102, %43 : vector<1x128xf32>
    %104 = arith.mulf %103, %22 : vector<1x128xf32>
    %105 = arith.mulf %46, %30 : vector<1x128xf32>
    %106 = arith.addf %104, %105 : vector<1x128xf32>
    %cst_25 = arith.constant 0.000000e+00 : f32
    %107 = vector.broadcast %cst_25 : f32 to vector<1x128xf32>
    %108 = arith.subf %107, %43 : vector<1x128xf32>
    %109 = arith.mulf %108, %23 : vector<1x128xf32>
    %110 = arith.mulf %46, %29 : vector<1x128xf32>
    %111 = arith.addf %109, %110 : vector<1x128xf32>
    %112 = arith.mulf %43, %22 : vector<1x128xf32>
    %113 = arith.mulf %46, %30 : vector<1x128xf32>
    %114 = arith.addf %112, %113 : vector<1x128xf32>
    %115 = arith.addf %25, %26 : vector<1x128xf32>
    %116 = arith.mulf %46, %115 : vector<1x128xf32>
    %cst_26 = arith.constant 1.000000e+00 : f32
    %117 = vector.broadcast %cst_26 : f32 to vector<1x128xf32>
    %118 = arith.subf %117, %116 : vector<1x128xf32>
    %119 = arith.mulf %86, %19 : vector<1x128xf32>
    %120 = arith.mulf %91, %20 : vector<1x128xf32>
    %121 = arith.addf %119, %120 : vector<1x128xf32>
    %122 = arith.mulf %94, %21 : vector<1x128xf32>
    %123 = arith.addf %121, %122 : vector<1x128xf32>
    %124 = arith.mulf %97, %19 : vector<1x128xf32>
    %125 = arith.mulf %101, %20 : vector<1x128xf32>
    %126 = arith.addf %124, %125 : vector<1x128xf32>
    %127 = arith.mulf %106, %21 : vector<1x128xf32>
    %128 = arith.addf %126, %127 : vector<1x128xf32>
    %129 = arith.mulf %111, %19 : vector<1x128xf32>
    %130 = arith.mulf %114, %20 : vector<1x128xf32>
    %131 = arith.addf %129, %130 : vector<1x128xf32>
    %132 = arith.mulf %118, %21 : vector<1x128xf32>
    %133 = arith.addf %131, %132 : vector<1x128xf32>
    %c0_27 = arith.constant 0 : index
    %c0_28 = arith.constant 0 : index
    %134 = vector.load %arg3[%c0_27, %c0_28] : memref<16x128xf32, #tpu.memory_space<vmem>>, vector<1x128xf32>
    tpu.vector_store %arg3[%c0_27, %c0_28], %50 {strides = array<i32>} : memref<16x128xf32, #tpu.memory_space<vmem>>, vector<1x128xf32>,
    %c1 = arith.constant 1 : index
    %c0_29 = arith.constant 0 : index
    %135 = vector.load %arg3[%c1, %c0_29] : memref<16x128xf32, #tpu.memory_space<vmem>>, vector<1x128xf32>
    tpu.vector_store %arg3[%c1, %c0_29], %55 {strides = array<i32>} : memref<16x128xf32, #tpu.memory_space<vmem>>, vector<1x128xf32>,
    %c2 = arith.constant 2 : index
    %c0_30 = arith.constant 0 : index
    %136 = vector.load %arg3[%c2, %c0_30] : memref<16x128xf32, #tpu.memory_space<vmem>>, vector<1x128xf32>
    tpu.vector_store %arg3[%c2, %c0_30], %58 {strides = array<i32>} : memref<16x128xf32, #tpu.memory_space<vmem>>, vector<1x128xf32>,
    %c3 = arith.constant 3 : index
    %c0_31 = arith.constant 0 : index
    %137 = vector.load %arg3[%c3, %c0_31] : memref<16x128xf32, #tpu.memory_space<vmem>>, vector<1x128xf32>
    tpu.vector_store %arg3[%c3, %c0_31], %123 {strides = array<i32>} : memref<16x128xf32, #tpu.memory_space<vmem>>, vector<1x128xf32>,
    %c4 = arith.constant 4 : index
    %c0_32 = arith.constant 0 : index
    %138 = vector.load %arg3[%c4, %c0_32] : memref<16x128xf32, #tpu.memory_space<vmem>>, vector<1x128xf32>
    tpu.vector_store %arg3[%c4, %c0_32], %61 {strides = array<i32>} : memref<16x128xf32, #tpu.memory_space<vmem>>, vector<1x128xf32>,
    %c5 = arith.constant 5 : index
    %c0_33 = arith.constant 0 : index
    %139 = vector.load %arg3[%c5, %c0_33] : memref<16x128xf32, #tpu.memory_space<vmem>>, vector<1x128xf32>
    tpu.vector_store %arg3[%c5, %c0_33], %65 {strides = array<i32>} : memref<16x128xf32, #tpu.memory_space<vmem>>, vector<1x128xf32>,
    %c6 = arith.constant 6 : index
    %c0_34 = arith.constant 0 : index
    %140 = vector.load %arg3[%c6, %c0_34] : memref<16x128xf32, #tpu.memory_space<vmem>>, vector<1x128xf32>
    tpu.vector_store %arg3[%c6, %c0_34], %70 {strides = array<i32>} : memref<16x128xf32, #tpu.memory_space<vmem>>, vector<1x128xf32>,
    %c7 = arith.constant 7 : index
    %c0_35 = arith.constant 0 : index
    %141 = vector.load %arg3[%c7, %c0_35] : memref<16x128xf32, #tpu.memory_space<vmem>>, vector<1x128xf32>
    tpu.vector_store %arg3[%c7, %c0_35], %128 {strides = array<i32>} : memref<16x128xf32, #tpu.memory_space<vmem>>, vector<1x128xf32>,
    %c8_36 = arith.constant 8 : index
    %c0_37 = arith.constant 0 : index
    %142 = vector.load %arg3[%c8_36, %c0_37] : memref<16x128xf32, #tpu.memory_space<vmem>>, vector<1x128xf32>
    tpu.vector_store %arg3[%c8_36, %c0_37], %75 {strides = array<i32>} : memref<16x128xf32, #tpu.memory_space<vmem>>, vector<1x128xf32>,
    %c9 = arith.constant 9 : index
    %c0_38 = arith.constant 0 : index
    %143 = vector.load %arg3[%c9, %c0_38] : memref<16x128xf32, #tpu.memory_space<vmem>>, vector<1x128xf32>
    tpu.vector_store %arg3[%c9, %c0_38], %78 {strides = array<i32>} : memref<16x128xf32, #tpu.memory_space<vmem>>, vector<1x128xf32>,
    %c10 = arith.constant 10 : index
    %c0_39 = arith.constant 0 : index
    %144 = vector.load %arg3[%c10, %c0_39] : memref<16x128xf32, #tpu.memory_space<vmem>>, vector<1x128xf32>
    tpu.vector_store %arg3[%c10, %c0_39], %82 {strides = array<i32>} : memref<16x128xf32, #tpu.memory_space<vmem>>, vector<1x128xf32>,
    %c11 = arith.constant 11 : index
    %c0_40 = arith.constant 0 : index
    %145 = vector.load %arg3[%c11, %c0_40] : memref<16x128xf32, #tpu.memory_space<vmem>>, vector<1x128xf32>
    tpu.vector_store %arg3[%c11, %c0_40], %133 {strides = array<i32>} : memref<16x128xf32, #tpu.memory_space<vmem>>, vector<1x128xf32>,
    return
  }
  func.func @transform_0(%arg0: i32) -> (i32, i32) {
    %c0_i32 = arith.constant 0 : i32
    %c0_i32_0 = arith.constant 0 : i32
    %c0_i32_1 = arith.constant 0 : i32
    return %c0_i32, %c0_i32_0 : i32, i32
  }
  func.func @transform_1(%arg0: i32) -> (i32, i32) {
    %c0_i32 = arith.constant 0 : i32
    %c0_i32_0 = arith.constant 0 : i32
    return %c0_i32, %arg0 : i32, i32
  }
  func.func @transform_2(%arg0: i32) -> (i32, i32) {
    %c0_i32 = arith.constant 0 : i32
    %c0_i32_0 = arith.constant 0 : i32
    return %c0_i32, %arg0 : i32, i32
  }
}

</mosaic_0001>

<llo_original>
// kernel: camera_pose_forward.1
$region0: #{camera_pose_forward.1}
  #allocation0 [shape = 'u32[]', space=smem, size = 0x4, offset = 0x4, fixed_abs, tag = 'smem constant byte address 0x4 - core index']
  #allocation1 [shape = 'u32[144,128]{1,0:T(1,128)}', space=vmem, size = 0x12000, scoped, tag = 'internal scratch']
  %s0 = inlined_call_operand.vmem [shape: f32[24,128], index: 0, kind: input, shape index: {}]
  %s1 = inlined_call_operand.vmem [shape: s32[1,128], index: 1, kind: input, shape index: {}]
  %s2 = inlined_call_operand.hbm [shape: f32[16,128], index: 2, kind: output, shape index: {}]
  %s3 = sld [smem:[#allocation0]]
  $region18: #{camera_pose_forward.1} parent=0
    _
  %s5 = ssub.s32 1, %s3
  %s6 = scalar_select 0, %s5, %s3
  $region1: #{camera_pose_forward.1} parent=0
    #allocation2 [shape = 'u8[8192]{0}', space=vmem, size = 0x2000, scoped, tag = 'output window, operand 0, single buffered']
    #allocation3 [shape = 's32[1]{0}', space=sflag, size = 0x4, scoped, tag = 'scoped memory for camera_pose_forward.1']
    %7 = vsyncpa [#allocation3], 0
    // Predicated region
    $region2: #{camera_pose_forward.1} parent=1 // pred_check
      _
    $region3: #{camera_pose_forward.1} parent=1 // pred_check_branch
      %9 = sbr.rel (0) target = $region5
    $region4: #{camera_pose_forward.1} parent=1 // pred_region
      _
    $region5: #{camera_pose_forward.1} parent=1 // pred_fallthru
      _
    // Predicated region
    $region6: #{camera_pose_forward.1} parent=1 // pred_check
      _
    $region7: #{camera_pose_forward.1} parent=1 // pred_check_branch
      %11 = sbr.rel (0) target = $region9
    $region8: #{camera_pose_forward.1} parent=1 // pred_region
      _
    $region9: #{camera_pose_forward.1} parent=1 // pred_fallthru
      _
    %v12 = vld [vmem:[%s0] sm:$0xff]
    %v13 = vld [vmem:[%s0 + $0x8] sm:$0xff]
    %v14 = vld [vmem:[%s0 + $0x10] sm:$0xff]
    %v15 = vlaneseq
    %v16 = vshrl.u32 %v15, 7
    %v17 = vadd.s32 %v16, 8
    %v18 = vadd.s32 %v16, 16
    %v19 = vadd.s32 %v16, 24
    %v20 = vadd.s32 %v16, 32
    %v21 = vadd.s32 %v16, 40
    %v22 = vadd.s32 %v16, 48
    %v23 = vadd.s32 %v16, 56
    %v24 = vadd.s32 %v16, 64
    %v25 = vadd.s32 %v16, 72
    %v26 = vadd.s32 %v16, 80
    %v27 = vadd.s32 %v16, 88
    %v28 = vadd.s32 %v16, 96
    %v29 = vadd.s32 %v16, 104
    %v30 = vadd.s32 %v16, 112
    %v31 = vadd.s32 %v16, 120
    %32 = vst [vmem:[#allocation2 + $0xc] sm:$0x7] 0.0
    %33 = vst [vmem:[#allocation2 + $0xf] sm:$0x1] 1.0
    %v34 = vld [vmem:[%s1] sm:$0x1]
    %v35 = vlaneseq
    %v36 = vshrl.u32 %v35, 7
    %v37 = vsub.s32 0, %v36
    %v38 = vrot.slane %v34, %v37
    %vm39 = vcmp.eq.s32.totalorder %v16, %v38
    %vm40 = vcmp.eq.s32.totalorder %v17, %v38
    %vm41 = vcmp.eq.s32.totalorder %v18, %v38
    %vm42 = vcmp.eq.s32.totalorder %v19, %v38
    %vm43 = vcmp.eq.s32.totalorder %v20, %v38
    %vm44 = vcmp.eq.s32.totalorder %v21, %v38
    %vm45 = vcmp.eq.s32.totalorder %v22, %v38
    %vm46 = vcmp.eq.s32.totalorder %v23, %v38
    %vm47 = vcmp.eq.s32.totalorder %v24, %v38
    %vm48 = vcmp.eq.s32.totalorder %v25, %v38
    %vm49 = vcmp.eq.s32.totalorder %v26, %v38
    %vm50 = vcmp.eq.s32.totalorder %v27, %v38
    %vm51 = vcmp.eq.s32.totalorder %v28, %v38
    %vm52 = vcmp.eq.s32.totalorder %v29, %v38
    %vm53 = vcmp.eq.s32.totalorder %v30, %v38
    %vm54 = vcmp.eq.s32.totalorder %v31, %v38
    %v55 = vsel %vm39, 1.0, 0.0
    %v56 = vsel %vm40, 1.0, 0.0
    %v57 = vsel %vm41, 1.0, 0.0
    %v58 = vsel %vm42, 1.0, 0.0
    %v59 = vsel %vm43, 1.0, 0.0
    %v60 = vsel %vm44, 1.0, 0.0
    %v61 = vsel %vm45, 1.0, 0.0
    %v62 = vsel %vm46, 1.0, 0.0
    %v63 = vsel %vm47, 1.0, 0.0
    %v64 = vsel %vm48, 1.0, 0.0
    %v65 = vsel %vm49, 1.0, 0.0
    %v66 = vsel %vm50, 1.0, 0.0
    %v67 = vsel %vm51, 1.0, 0.0
    %v68 = vsel %vm52, 1.0, 0.0
    %v69 = vsel %vm53, 1.0, 0.0
    %v70 = vsel %vm54, 1.0, 0.0
    %71 = vmatprep.subr.mxu0 0.0
    %72 = vmatpush1.msra.mxu0 %v70
    %73 = vmatprep.subr.mxu0 0.0
    %74 = vmatpush1.msra.mxu0 %v69
    %75 = vmatprep.subr.mxu0 0.0
    %76 = vmatpush1.msra.mxu0 %v68
    %77 = vmatprep.subr.mxu0 0.0
    %78 = vmatpush1.msra.mxu0 %v67
    %79 = vmatprep.subr.mxu0 0.0
    %80 = vmatpush1.msra.mxu0 %v66
    %81 = vmatprep.subr.mxu0 0.0
    %82 = vmatpush1.msra.mxu0 %v65
    %83 = vmatprep.subr.mxu0 0.0
    %84 = vmatpush1.msra.mxu0 %v64
    %85 = vmatprep.subr.mxu0 0.0
    %86 = vmatpush1.msra.mxu0 %v63
    %87 = vmatprep.subr.mxu0 0.0
    %88 = vmatpush1.msra.mxu0 %v62
    %89 = vmatprep.subr.mxu0 0.0
    %90 = vmatpush1.msra.mxu0 %v61
    %91 = vmatprep.subr.mxu0 0.0
    %92 = vmatpush1.msra.mxu0 %v60
    %93 = vmatprep.subr.mxu0 0.0
    %94 = vmatpush1.msra.mxu0 %v59
    %95 = vmatprep.subr.mxu0 0.0
    %96 = vmatpush1.msra.mxu0 %v58
    %97 = vmatprep.subr.mxu0 0.0
    %98 = vmatpush1.msra.mxu0 %v57
    %99 = vmatprep.subr.mxu0 0.0
    %100 = vmatpush1.msra.mxu0 %v56
    %101 = vmatprep.subr.mxu0 0.0
    %102 = vmatpush1.msra.mxu0 %v55
    %103 = vmatprep.subr.mxu0 0.0
    %104 = vmatpush2.msra.mxu0 0.0
    %105 = vmatprep.subr.mxu0 0.0
    %106 = vmatpush2.msra.mxu0 0.0
    %107 = vmatprep.subr.mxu0 0.0
    %108 = vmatpush2.msra.mxu0 0.0
    %109 = vmatprep.subr.mxu0 0.0
    %110 = vmatpush2.msra.mxu0 0.0
    %111 = vmatprep.subr.mxu0 0.0
    %112 = vmatpush2.msra.mxu0 0.0
    %113 = vmatprep.subr.mxu0 0.0
    %114 = vmatpush2.msra.mxu0 0.0
    %115 = vmatprep.subr.mxu0 0.0
    %116 = vmatpush2.msra.mxu0 0.0
    %117 = vmatprep.subr.mxu0 0.0
    %118 = vmatpush2.msra.mxu0 0.0
    %119 = vmatprep.subr.mxu0 0.0
    %120 = vmatpush2.msra.mxu0 0.0
    %121 = vmatprep.subr.mxu0 0.0
    %122 = vmatpush2.msra.mxu0 0.0
    %123 = vmatprep.subr.mxu0 0.0
    %124 = vmatpush2.msra.mxu0 0.0
    %125 = vmatprep.subr.mxu0 0.0
    %126 = vmatpush2.msra.mxu0 0.0
    %127 = vmatprep.subr.mxu0 0.0
    %128 = vmatpush2.msra.mxu0 0.0
    %129 = vmatprep.subr.mxu0 0.0
    %130 = vmatpush2.msra.mxu0 0.0
    %131 = vmatprep.subr.mxu0 0.0
    %132 = vmatpush2.msra.mxu0 0.0
    %133 = vmatprep.subr.mxu0 0.0
    %134 = vmatpush2.msra.mxu0 0.0
    %135 = vmatprep.mubr.f32.mxu0 0.0
    %136 = vmatmul.mubr.f32.gmra.mxu0 %v13
    %v137 = vpop.f32.mrf.mxu0
    %v138 = vadd.f32 0.0, %v137
    %v139 = vpop.f32.mrf.mxu0
    %140 = vdwg.mxu0
    %141 = vmatprep.subr.mxu0 0.0
    %142 = vmatpush1.msra.mxu0 %v70
    %143 = vmatprep.subr.mxu0 0.0
    %144 = vmatpush1.msra.mxu0 %v69
    %145 = vmatprep.subr.mxu0 0.0
    %146 = vmatpush1.msra.mxu0 %v68
    %147 = vmatprep.subr.mxu0 0.0
    %148 = vmatpush1.msra.mxu0 %v67
    %149 = vmatprep.subr.mxu0 0.0
    %150 = vmatpush1.msra.mxu0 %v66
    %151 = vmatprep.subr.mxu0 0.0
    %152 = vmatpush1.msra.mxu0 %v65
    %153 = vmatprep.subr.mxu0 0.0
    %154 = vmatpush1.msra.mxu0 %v64
    %155 = vmatprep.subr.mxu0 0.0
    %156 = vmatpush1.msra.mxu0 %v63
    %157 = vmatprep.subr.mxu0 0.0
    %158 = vmatpush1.msra.mxu0 %v62
    %159 = vmatprep.subr.mxu0 0.0
    %160 = vmatpush1.msra.mxu0 %v61
    %161 = vmatprep.subr.mxu0 0.0
    %162 = vmatpush1.msra.mxu0 %v60
    %163 = vmatprep.subr.mxu0 0.0
    %164 = vmatpush1.msra.mxu0 %v59
    %165 = vmatprep.subr.mxu0 0.0
    %166 = vmatpush1.msra.mxu0 %v58
    %167 = vmatprep.subr.mxu0 0.0
    %168 = vmatpush1.msra.mxu0 %v57
    %169 = vmatprep.subr.mxu0 0.0
    %170 = vmatpush1.msra.mxu0 %v56
    %171 = vmatprep.subr.mxu0 0.0
    %172 = vmatpush1.msra.mxu0 %v55
    %173 = vmatprep.subr.mxu0 0.0
    %174 = vmatpush2.msra.mxu0 0.0
    %175 = vmatprep.subr.mxu0 0.0
    %176 = vmatpush2.msra.mxu0 0.0
    %177 = vmatprep.subr.mxu0 0.0
    %178 = vmatpush2.msra.mxu0 0.0
    %179 = vmatprep.subr.mxu0 0.0
    %180 = vmatpush2.msra.mxu0 0.0
    %181 = vmatprep.subr.mxu0 0.0
    %182 = vmatpush2.msra.mxu0 0.0
    %183 = vmatprep.subr.mxu0 0.0
    %184 = vmatpush2.msra.mxu0 0.0
    %185 = vmatprep.subr.mxu0 0.0
    %186 = vmatpush2.msra.mxu0 0.0
    %187 = vmatprep.subr.mxu0 0.0
    %188 = vmatpush2.msra.mxu0 0.0
    %189 = vmatprep.subr.mxu0 0.0
    %190 = vmatpush2.msra.mxu0 0.0
    %191 = vmatprep.subr.mxu0 0.0
    %192 = vmatpush2.msra.mxu0 0.0
    %193 = vmatprep.subr.mxu0 0.0
    %194 = vmatpush2.msra.mxu0 0.0
    %195 = vmatprep.subr.mxu0 0.0
    %196 = vmatpush2.msra.mxu0 0.0
    %197 = vmatprep.subr.mxu0 0.0
    %198 = vmatpush2.msra.mxu0 0.0
    %199 = vmatprep.subr.mxu0 0.0
    %200 = vmatpush2.msra.mxu0 0.0
    %201 = vmatprep.subr.mxu0 0.0
    %202 = vmatpush2.msra.mxu0 0.0
    %203 = vmatprep.subr.mxu0 0.0
    %204 = vmatpush2.msra.mxu0 0.0
    %205 = vmatprep.mubr.f32.mxu0 0.0
    %206 = vmatmul.mubr.f32.gmra.mxu0 %v12
    %v207 = vpop.f32.mrf.mxu0
    %v208 = vadd.f32 %v138, %v207
    %v209 = vpop.f32.mrf.mxu0
    %210 = vdwg.mxu0
    %211 = vmatprep.subr.mxu0 0.0
    %212 = vmatpush1.msra.mxu0 %v70
    %213 = vmatprep.subr.mxu0 0.0
    %214 = vmatpush1.msra.mxu0 %v69
    %215 = vmatprep.subr.mxu0 0.0
    %216 = vmatpush1.msra.mxu0 %v68
    %217 = vmatprep.subr.mxu0 0.0
    %218 = vmatpush1.msra.mxu0 %v67
    %219 = vmatprep.subr.mxu0 0.0
    %220 = vmatpush1.msra.mxu0 %v66
    %221 = vmatprep.subr.mxu0 0.0
    %222 = vmatpush1.msra.mxu0 %v65
    %223 = vmatprep.subr.mxu0 0.0
    %224 = vmatpush1.msra.mxu0 %v64
    %225 = vmatprep.subr.mxu0 0.0
    %226 = vmatpush1.msra.mxu0 %v63
    %227 = vmatprep.subr.mxu0 0.0
    %228 = vmatpush1.msra.mxu0 %v62
    %229 = vmatprep.subr.mxu0 0.0
    %230 = vmatpush1.msra.mxu0 %v61
    %231 = vmatprep.subr.mxu0 0.0
    %232 = vmatpush1.msra.mxu0 %v60
    %233 = vmatprep.subr.mxu0 0.0
    %234 = vmatpush1.msra.mxu0 %v59
    %235 = vmatprep.subr.mxu0 0.0
    %236 = vmatpush1.msra.mxu0 %v58
    %237 = vmatprep.subr.mxu0 0.0
    %238 = vmatpush1.msra.mxu0 %v57
    %239 = vmatprep.subr.mxu0 0.0
    %240 = vmatpush1.msra.mxu0 %v56
    %241 = vmatprep.subr.mxu0 0.0
    %242 = vmatpush1.msra.mxu0 %v55
    %243 = vmatprep.subr.mxu0 0.0
    %244 = vmatpush2.msra.mxu0 0.0
    %245 = vmatprep.subr.mxu0 0.0
    %246 = vmatpush2.msra.mxu0 0.0
    %247 = vmatprep.subr.mxu0 0.0
    %248 = vmatpush2.msra.mxu0 0.0
    %249 = vmatprep.subr.mxu0 0.0
    %250 = vmatpush2.msra.mxu0 0.0
    %251 = vmatprep.subr.mxu0 0.0
    %252 = vmatpush2.msra.mxu0 0.0
    %253 = vmatprep.subr.mxu0 0.0
    %254 = vmatpush2.msra.mxu0 0.0
    %255 = vmatprep.subr.mxu0 0.0
    %256 = vmatpush2.msra.mxu0 0.0
    %257 = vmatprep.subr.mxu0 0.0
    %258 = vmatpush2.msra.mxu0 0.0
    %259 = vmatprep.subr.mxu0 0.0
    %260 = vmatpush2.msra.mxu0 0.0
    %261 = vmatprep.subr.mxu0 0.0
    %262 = vmatpush2.msra.mxu0 0.0
    %263 = vmatprep.subr.mxu0 0.0
    %264 = vmatpush2.msra.mxu0 0.0
    %265 = vmatprep.subr.mxu0 0.0
    %266 = vmatpush2.msra.mxu0 0.0
    %267 = vmatprep.subr.mxu0 0.0
    %268 = vmatpush2.msra.mxu0 0.0
    %269 = vmatprep.subr.mxu0 0.0
    %270 = vmatpush2.msra.mxu0 0.0
    %271 = vmatprep.subr.mxu0 0.0
    %272 = vmatpush2.msra.mxu0 0.0
    %273 = vmatprep.subr.mxu0 0.0
    %274 = vmatpush2.msra.mxu0 0.0
    %275 = vmatprep.mubr.f32.mxu0 0.0
    %276 = vmatmul.mubr.f32.gmra.mxu0 %v14
    %v277 = vpop.f32.mrf.mxu0
    %v278 = vadd.f32 0.0, %v277
    %v279 = vpop.f32.mrf.mxu0
    %280 = vdwg.mxu0
    %v281 = vadd.f32 %v208, %v278
    %v282 = vmul.f32 %v281, %v281
    %v284 = vrot.slane %v281, 1
    %v286 = vmul.f32 %v281, %v284
    %v287 = vrot.slane %v281, 2
    %v289 = vmul.f32 %v281, %v287
    %v291 = vrot.slane %v282, 1
    %v293 = vadd.f32 %v282, %v291
    %v294 = vrot.slane %v282, 2
    %v296 = vadd.f32 %v293, %v294
    %v297 = vmax.f32 %v296, 0.0001
    %v298 = vrsqrt.pop %v297
    %v299 = vmul.f32 %v297, %v298
    %v300 = vmul.f32 %v298, %v298
    %v301 = vand.u32 2147483647, %v299
    %vm302 = vcmp.le.f32.partialorder %v301, 0.7853982
    %vm303 = vcmp.lt.s32.totalorder %v299, 0
    %v304 = vand.u32 %v299, 2139095040
    %v305 = vshrl.u32 %v304, 23
    %v306 = vsub.s32 %v305, 127
    %v307 = vand.u32 2147483647, %v299
    %v308 = vand.u32 %v307, 8388607
    %v309 = vor.u32 %v308, 8388608
    %v310 = vsub.s32 0, %v309
    %v311 = vadd.s32 %v306, 1
    %vm312 = vcmp.gt.s32.totalorder %v311, 0
    %v313 = vsel %vm312, %v311, 0
    %v314 = vshrl.u32 %v313, 5
    %v315 = vand.u32 %v313, 31
    %v316 = vsub.s32 32, %v315
    %v317 = vshrl.u32 683565275, %v316
    %v318 = vshll.u32 683565275, %v315
    %v319 = vshrl.u32 2475754826, %v316
    %v320 = vor.u32 %v318, %v319
    %v321 = vshll.u32 2475754826, %v315
    %v322 = vshrl.u32 2131351028, %v316
    %v323 = vor.u32 %v321, %v322
    %v324 = vshll.u32 2131351028, %v315
    %v325 = vshrl.u32 2102212464, %v316
    %v326 = vor.u32 %v324, %v325
    %v327 = vshll.u32 2102212464, %v315
    %v328 = vshrl.u32 920167782, %v316
    %v329 = vor.u32 %v327, %v328
    %v330 = vshll.u32 920167782, %v315
    %v331 = vshrl.u32 1326507024, %v316
    %v332 = vor.u32 %v330, %v331
    %vm333 = vcmp.lt.s32.totalorder %v314, 1
    %vm334 = vcmp.lt.s32.totalorder %v314, 2
    %vm335 = vcmp.lt.s32.totalorder %v314, 3
    %vm336 = vcmp.lt.s32.totalorder %v314, 4
    %v337 = vsel %vm333, %v317, %v320
    %v338 = vsel %vm336, %v326, 2102212464
    %v339 = vsel %vm335, %v323, %v338
    %v340 = vsel %vm334, %v337, %v339
    %v341 = vsel %vm333, %v320, %v323
    %v342 = vsel %vm336, %v329, 920167782
    %v343 = vsel %vm335, %v326, %v342
    %v344 = vsel %vm334, %v341, %v343
    %v345 = vsel %vm333, %v323, %v326
    %v346 = vsel %vm336, %v332, 1326507024
    %v347 = vsel %vm335, %v329, %v346
    %v348 = vsel %vm334, %v345, %v347
    %v349 = vshll.u32 %v309, 8
    %v350 = vmul.u32.u64.compose %v349, %v348
    %v351 = vextract.low.u32 %v350
    %v352 = vextract.high.u32 %v350
    %v353 = vmul.u32.u64.compose %v349, %v344
    %v354 = vextract.low.u32 %v353
    %v355 = vextract.high.u32 %v353
    %v356 = vmul.u32 %v349, %v340
    %v357 = vadd.s32 %v352, %v354
    %vm358 = vc.u32 %v352, %v354
    %v359 = vadd.s32 %v355, 1
    %v360 = vsel %vm358, %v359, %v355
    %v361 = vadd.s32 %v356, %v360
    %v362 = vadd.s32 %v361, 536870912
    %v363 = vshrl.u32 %v362, 30
    %v364 = vshll.u32 %v363, 30
    %v365 = vsub.s32 %v361, %v364
    %vm366 = vcmp.lt.s32.totalorder %v365, 0
    %v367 = vsub.s32 0, %v365
    %v368 = vsel %vm366, %v367, %v365
    %v369 = vclz %v368
    %v370 = vsub.s32 %v369, 2
    %vm371 = vcmp.gt.s32.totalorder 0, %v370
    %v372 = vsel %vm371, 0, %v370
    %v373 = vsub.s32 32, %v372
    %v374 = vshll.u32 %v365, %v372
    %v375 = vshrl.u32 %v357, %v373
    %v376 = vor.u32 %v374, %v375
    %v377 = vsub.s32 4294967266, %v372
    %v378 = vadd.s32 %v377, 127
    %v379 = vshll.u32 %v378, 23
    %v380 = vor.u32 4788187, %v379
    %v381 = vand.u32 2147483647, %v380
    %v383 = vcvt.s32.f32 %v376
    %v384 = vmul.f32 %v383, %v381
    %v385 = vxor.u32 %v384, 2147483648
    %v386 = vsel %vm303, %v385, %v384
    %v387 = vsub.s32 4, %v363
    %v388 = vsel %vm303, %v387, %v363
    %v389 = vsel %vm302, %v299, %v386
    %v390 = vsel %vm302, 0, %v388
    %v391 = vcosq.f32.pop %v389
    %v392 = vsinq.f32.pop %v389
    %vm393 = vweird.f32 %v299
    %v394 = vadd.s32 %v390, 3
    %v395 = vand.u32 %v394, 3
    %vm396 = vcmp.lt.s32.totalorder %v395, 2
    %vm397 = vcmp.eq.s32.totalorder %v395, 0
    %v398 = vxor.u32 %v392, 2147483648
    %v399 = vsel %vm397, %v391, %v398
    %vm400 = vcmp.eq.s32.totalorder %v395, 2
    %v401 = vxor.u32 %v391, 2147483648
    %v402 = vsel %vm400, %v401, %v392
    %v403 = vsel %vm396, %v399, %v402
    %v404 = vsel %vm393, nan, %v403
    %v405 = vand.u32 2147483647, %v299
    %vm406 = vcmp.le.f32.partialorder %v405, 0.7853982
    %vm407 = vcmp.lt.s32.totalorder %v299, 0
    %v408 = vand.u32 %v299, 2139095040
    %v409 = vshrl.u32 %v408, 23
    %v410 = vsub.s32 %v409, 127
    %v411 = vand.u32 2147483647, %v299
    %v412 = vand.u32 %v411, 8388607
    %v413 = vor.u32 %v412, 8388608
    %v414 = vsub.s32 0, %v413
    %v415 = vadd.s32 %v410, 1
    %vm416 = vcmp.gt.s32.totalorder %v415, 0
    %v417 = vsel %vm416, %v415, 0
    %v418 = vshrl.u32 %v417, 5
    %v419 = vand.u32 %v417, 31
    %v420 = vsub.s32 32, %v419
    %v421 = vshrl.u32 683565275, %v420
    %v422 = vshll.u32 683565275, %v419
    %v423 = vshrl.u32 2475754826, %v420
    %v424 = vor.u32 %v422, %v423
    %v425 = vshll.u32 2475754826, %v419
    %v426 = vshrl.u32 2131351028, %v420
    %v427 = vor.u32 %v425, %v426
    %v428 = vshll.u32 2131351028, %v419
    %v429 = vshrl.u32 2102212464, %v420
    %v430 = vor.u32 %v428, %v429
    %v431 = vshll.u32 2102212464, %v419
    %v432 = vshrl.u32 920167782, %v420
    %v433 = vor.u32 %v431, %v432
    %v434 = vshll.u32 920167782, %v419
    %v435 = vshrl.u32 1326507024, %v420
    %v436 = vor.u32 %v434, %v435
    %vm437 = vcmp.lt.s32.totalorder %v418, 1
    %vm438 = vcmp.lt.s32.totalorder %v418, 2
    %vm439 = vcmp.lt.s32.totalorder %v418, 3
    %vm440 = vcmp.lt.s32.totalorder %v418, 4
    %v441 = vsel %vm437, %v421, %v424
    %v442 = vsel %vm440, %v430, 2102212464
    %v443 = vsel %vm439, %v427, %v442
    %v444 = vsel %vm438, %v441, %v443
    %v445 = vsel %vm437, %v424, %v427
    %v446 = vsel %vm440, %v433, 920167782
    %v447 = vsel %vm439, %v430, %v446
    %v448 = vsel %vm438, %v445, %v447
    %v449 = vsel %vm437, %v427, %v430
    %v450 = vsel %vm440, %v436, 1326507024
    %v451 = vsel %vm439, %v433, %v450
    %v452 = vsel %vm438, %v449, %v451
    %v453 = vshll.u32 %v413, 8
    %v454 = vmul.u32.u64.compose %v453, %v452
    %v455 = vextract.low.u32 %v454
    %v456 = vextract.high.u32 %v454
    %v457 = vmul.u32.u64.compose %v453, %v448
    %v458 = vextract.low.u32 %v457
    %v459 = vextract.high.u32 %v457
    %v460 = vmul.u32 %v453, %v444
    %v461 = vadd.s32 %v456, %v458
    %vm462 = vc.u32 %v456, %v458
    %v463 = vadd.s32 %v459, 1
    %v464 = vsel %vm462, %v463, %v459
    %v465 = vadd.s32 %v460, %v464
    %v466 = vadd.s32 %v465, 536870912
    %v467 = vshrl.u32 %v466, 30
    %v468 = vshll.u32 %v467, 30
    %v469 = vsub.s32 %v465, %v468
    %vm470 = vcmp.lt.s32.totalorder %v469, 0
    %v471 = vsub.s32 0, %v469
    %v472 = vsel %vm470, %v471, %v469
    %v473 = vclz %v472
    %v474 = vsub.s32 %v473, 2
    %vm475 = vcmp.gt.s32.totalorder 0, %v474
    %v476 = vsel %vm475, 0, %v474
    %v477 = vsub.s32 32, %v476
    %v478 = vshll.u32 %v469, %v476
    %v479 = vshrl.u32 %v461, %v477
    %v480 = vor.u32 %v478, %v479
    %v481 = vsub.s32 4294967266, %v476
    %v482 = vadd.s32 %v481, 127
    %v483 = vshll.u32 %v482, 23
    %v484 = vor.u32 4788187, %v483
    %v485 = vand.u32 2147483647, %v484
    %v487 = vcvt.s32.f32 %v480
    %v488 = vmul.f32 %v487, %v485
    %v489 = vxor.u32 %v488, 2147483648
    %v490 = vsel %vm407, %v489, %v488
    %v491 = vsub.s32 4, %v467
    %v492 = vsel %vm407, %v491, %v467
    %v493 = vsel %vm406, %v299, %v490
    %v494 = vsel %vm406, 0, %v492
    %v495 = vcosq.f32.pop %v493
    %v496 = vsinq.f32.pop %v493
    %vm497 = vweird.f32 %v299
    %v498 = vand.u32 %v494, 3
    %vm499 = vcmp.lt.s32.totalorder %v498, 2
    %vm500 = vcmp.eq.s32.totalorder %v498, 0
    %v501 = vxor.u32 %v496, 2147483648
    %v502 = vsel %vm500, %v495, %v501
    %vm503 = vcmp.eq.s32.totalorder %v498, 2
    %v504 = vxor.u32 %v495, 2147483648
    %v505 = vsel %vm503, %v504, %v496
    %v506 = vsel %vm499, %v502, %v505
    %v507 = vsel %vm497, nan, %v506
    %v508 = vmul.f32 %v404, %v298
    %v509 = vsub.f32 1.0, %v507
    %v510 = vmul.f32 %v509, %v300
    %v511 = vsub.f32 %v299, %v404
    %v512 = vmul.f32 %v300, %v298
    %v513 = vmul.f32 %v511, %v512
    %v515 = vrot.slane %v293, 1
    %v517 = vmul.f32 %v510, %v515
    %v518 = vsub.f32 1.0, %v517
    %v519 = vsub.f32 0.0, %v508
    %v520 = vmul.f32 %v519, %v287
    %v521 = vmul.f32 %v510, %v286
    %v522 = vadd.f32 %v520, %v521
    %v523 = vmul.f32 %v508, %v284
    %v524 = vmul.f32 %v510, %v289
    %v525 = vadd.f32 %v523, %v524
    %v526 = vmul.f32 %v508, %v287
    %v527 = vadd.f32 %v526, %v521
    %v528 = vadd.f32 %v282, %v294
    %v529 = vmul.f32 %v510, %v528
    %v530 = vsub.f32 1.0, %v529
    %v531 = vmul.f32 %v519, %v281
    %v533 = vrot.slane %v286, 1
    %v535 = vmul.f32 %v510, %v533
    %v536 = vadd.f32 %v531, %v535
    %v537 = vmul.f32 %v519, %v284
    %v538 = vadd.f32 %v537, %v524
    %v539 = vmul.f32 %v508, %v281
    %v540 = vadd.f32 %v539, %v535
    %v541 = vmul.f32 %v510, %v293
    %v542 = vsub.f32 1.0, %v541
    %v543 = vmul.f32 %v513, %v515
    %v544 = vsub.f32 1.0, %v543
    %v545 = vsub.f32 0.0, %v510
    %v546 = vmul.f32 %v545, %v287
    %v547 = vmul.f32 %v513, %v286
    %v548 = vadd.f32 %v546, %v547
    %v549 = vmul.f32 %v510, %v284
    %v550 = vmul.f32 %v513, %v289
    %v551 = vadd.f32 %v549, %v550
    %v552 = vmul.f32 %v510, %v287
    %v553 = vadd.f32 %v552, %v547
    %v554 = vmul.f32 %v513, %v528
    %v555 = vsub.f32 1.0, %v554
    %v556 = vmul.f32 %v545, %v281
    %v557 = vmul.f32 %v513, %v533
    %v558 = vadd.f32 %v556, %v557
    %v559 = vmul.f32 %v545, %v284
    %v560 = vadd.f32 %v559, %v550
    %v561 = vmul.f32 %v510, %v281
    %v562 = vadd.f32 %v561, %v557
    %v563 = vmul.f32 %v513, %v293
    %v564 = vsub.f32 1.0, %v563
    %v565 = vrot.slane %v281, 5
    %v567 = vmul.f32 %v544, %v565
    %v568 = vrot.slane %v281, 6
    %v570 = vmul.f32 %v548, %v568
    %v571 = vadd.f32 %v567, %v570
    %v572 = vrot.slane %v281, 7
    %v574 = vmul.f32 %v551, %v572
    %v575 = vadd.f32 %v571, %v574
    %v576 = vmul.f32 %v553, %v565
    %v577 = vmul.f32 %v555, %v568
    %v578 = vadd.f32 %v576, %v577
    %v579 = vmul.f32 %v558, %v572
    %v580 = vadd.f32 %v578, %v579
    %v581 = vmul.f32 %v560, %v565
    %v582 = vmul.f32 %v562, %v568
    %v583 = vadd.f32 %v581, %v582
    %v584 = vmul.f32 %v564, %v572
    %v585 = vadd.f32 %v583, %v584
    %586 = vst [vmem:[#allocation2 - $0x3] sm:$0x8] %v518
    %587 = vst [vmem:[#allocation2 - $0x2] sm:$0x8] %v522
    %588 = vst [vmem:[#allocation2 - $0x1] sm:$0x8] %v525
    %589 = vst [vmem:[#allocation2] sm:$0x8] %v575
    %590 = vst [vmem:[#allocation2 + $0x1] sm:$0x8] %v527
    %591 = vst [vmem:[#allocation2 + $0x2] sm:$0x8] %v530
    %592 = vst [vmem:[#allocation2 + $0x3] sm:$0x8] %v536
    %593 = vst [vmem:[#allocation2 + $0x4] sm:$0x8] %v580
    %594 = vst [vmem:[#allocation2 + $0x5] sm:$0x8] %v538
    %595 = vst [vmem:[#allocation2 + $0x6] sm:$0x8] %v540
    %596 = vst [vmem:[#allocation2 + $0x7] sm:$0x8] %v542
    %597 = vst [vmem:[#allocation2 + $0x8] sm:$0x8] %v585
    // Predicated region
    $region10: #{camera_pose_forward.1} parent=1 // pred_check
      _
    $region11: #{camera_pose_forward.1} parent=1 // pred_check_branch
      %599 = sbr.rel (0) target = $region13
    $region12: #{camera_pose_forward.1} parent=1 // pred_region
      %s601 = ssub.s32 256, 256
      %602 = vsyncadd [#allocation3], %s601
      %s603 = sshll.u32 [#allocation2], 4
      %s604 = int_to_ptr.vmem [resolvable:$true] %s603
      %609 = dma.vmem_to_hbm [thread:$0]  %s604, 256, %s2, [#allocation3], 128, 128, 8
    $region13: #{camera_pose_forward.1} parent=1 // pred_fallthru
      _
    // Predicated region
    $region14: #{camera_pose_forward.1} parent=1 // pred_check
      _
    $region15: #{camera_pose_forward.1} parent=1 // pred_check_branch
      %611 = sbr.rel (0) target = $region17
    $region16: #{camera_pose_forward.1} parent=1 // pred_region
      %612 = dma.done [#allocation3], 256
    $region17: #{camera_pose_forward.1} parent=1 // pred_fallthru
      _
    %613 = vsyncpa [#allocation3], 1

</llo_original>
